<compile_context>
chip_gen: v7x
topology: tpu7x:2x2x1
jax: 0.10.0
libtpu: 0.0.40
codegen_flags: <defaults>
</compile_context>

<pallas_src>
import jax
import jax.numpy as jnp
from jax.experimental import pallas as pl
from jax.experimental.pallas import tpu as pltpu

C_IN = 4          # input channels
C_FEAT = 32       # backbone output channels  (= num_features_before_fcnn)
OUT_FEATURES = 10
KH = KW = 3       # conv kernel size (pad=1 -> "same")
KPAD = 128        # im2col contraction dim (KH*KW*C_IN = 36) zero-padded to 128


# ---------------------------------------------------------------------------
# Fused kernel: conv(as one matmul) + bias + ReLU + global-avg-pool + fc1
# ---------------------------------------------------------------------------
def _fused_forward_kernel(xT_ref, wT_ref, b_ref, pool_ref, fcw_ref, fcb_ref,
                          o_ref):
    # xT_ref  : (KPAD, N*H*W)        im2col'd activations (K on sublanes)
    # wT_ref  : (C_FEAT, KPAD)       conv weight, transposed + K-padded
    # b_ref   : (C_FEAT, 1)          conv bias (broadcast over lanes)
    # pool_ref: (N, N*H*W)           per-image averaging matrix (1/HW or 0)
    # fcw_ref : (C_FEAT, OUT)        fc1 weight
    # fcb_ref : (1, OUT)             fc1 bias
    # o_ref   : (N, OUT)             logits
    h = jnp.dot(wT_ref[...], xT_ref[...],
                preferred_element_type=jnp.float32)          # (C_FEAT, N*H*W)
    h = jnp.maximum(h + b_ref[...], 0.0)                     # bias + ReLU
    # Global average pool per image: (N, NHW) @ (NHW, C_FEAT)
    feats = jnp.dot(pool_ref[...], h.T,
                    preferred_element_type=jnp.float32)      # (N, C_FEAT)
    # fc1
    o_ref[...] = (jnp.dot(feats, fcw_ref[...],
                          preferred_element_type=jnp.float32)
                  + fcb_ref[...]).astype(o_ref.dtype)


def fused_forward(x_nhwc, conv_w, conv_b, fc_w, fc_b):
    """x_nhwc: (N,H,W,Cin); conv_w: (KH,KW,Cin,Cout); fc_w: (Cout,OUT)."""
    N, H, W, Cin = x_nhwc.shape
    Cout = conv_w.shape[-1]
    Fo = fc_w.shape[-1]
    HW = H * W
    NHW = N * HW
    K = KH * KW * Cin

    # ---- im2col in the wrapper (cheap XLA ops at this size) ----------------
    ph, pw = KH // 2, KW // 2
    x_pad = jnp.pad(x_nhwc, ((0, 0), (ph, ph), (pw, pw), (0, 0)))
    cols = [x_pad[:, kh:kh + H, kw:kw + W, :]
            for kh in range(KH) for kw in range(KW)]          # tap-major
    x_col = jnp.concatenate(cols, axis=-1).reshape(NHW, K)    # (NHW, K)
    x_colT = jnp.pad(x_col.T, ((0, KPAD - K), (0, 0)))        # (KPAD, NHW)

    # Conv weight, matching tap-major/channel-minor im2col ordering.
    w_flat = conv_w.reshape(K, Cout)                          # (K, Cout)
    w_T = jnp.pad(w_flat.T, ((0, 0), (0, KPAD - K)))          # (Cout, KPAD)
    b_col = conv_b.reshape(Cout, 1)

    # Per-image averaging matrix: pool_T[n, i] = 1/HW if i // HW == n else 0.
    seg = jnp.arange(NHW, dtype=jnp.int32) // HW
    pool_T = (seg[None, :] == jnp.arange(N, dtype=jnp.int32)[:, None]
              ).astype(jnp.float32) / float(HW)               # (N, NHW)

    fcb_row = fc_b.reshape(1, Fo)

    return pl.pallas_call(
        _fused_forward_kernel,
        out_shape=jax.ShapeDtypeStruct((N, Fo), jnp.float32),
        grid=(1,),
        in_specs=[
            pl.BlockSpec((KPAD, NHW), lambda i: (0, 0)),
            pl.BlockSpec((Cout, KPAD), lambda i: (0, 0)),
            pl.BlockSpec((Cout, 1), lambda i: (0, 0)),
            pl.BlockSpec((N, NHW), lambda i: (0, 0)),
            pl.BlockSpec((Cout, Fo), lambda i: (0, 0)),
            pl.BlockSpec((1, Fo), lambda i: (0, 0)),
        ],
        out_specs=pl.BlockSpec((N, Fo), lambda i: (0, 0)),
        compiler_params=pltpu.CompilerParams(
            dimension_semantics=("arbitrary",)),
    )(x_colT, w_T, b_col, pool_T, fc_w, fcb_row)


# ---------------------------------------------------------------------------
# Full Network forward
# ---------------------------------------------------------------------------
def network_forward(x_nchw, params):
    x_nhwc = jnp.transpose(x_nchw, (0, 2, 3, 1))              # NCHW -> NHWC
    # backbone -> view(N, -1) -> fc1, all fused in one Pallas call
    return fused_forward(x_nhwc, params["conv_w"], params["conv_b"],
                         params["fc_w"], params["fc_b"])


def init_params(key):
    k1, k2, k3, k4 = jax.random.split(key, 4)
    return {
        "conv_w": 0.1 * jax.random.normal(k1, (KH, KW, C_IN, C_FEAT), jnp.float32),
        "conv_b": 0.1 * jax.random.normal(k2, (C_FEAT,), jnp.float32),
        "fc_w": 0.1 * jax.random.normal(k3, (C_FEAT, OUT_FEATURES), jnp.float32),
        "fc_b": 0.1 * jax.random.normal(k4, (OUT_FEATURES,), jnp.float32),
    }


def reference_forward(x_nchw, params):
    """Pure-JAX reference (same math, no Pallas)."""
    x = jnp.transpose(x_nchw, (0, 2, 3, 1))
    N, H, W, _ = x.shape
    x_pad = jnp.pad(x, ((0, 0), (1, 1), (1, 1), (0, 0)))
    acc = jnp.zeros((N, H, W, C_FEAT), jnp.float32)
    for kh in range(KH):
        for kw in range(KW):
            acc = acc + jnp.einsum(
                "nhwc,co->nhwo",
                x_pad[:, kh:kh + H, kw:kw + W, :],
                params["conv_w"][kh, kw],
            )
    acc = jnp.maximum(acc + params["conv_b"], 0.0)
    feats = jnp.mean(acc, axis=(1, 2))
    return feats @ params["fc_w"] + params["fc_b"]


if __name__ == "__main__":
    key = jax.random.PRNGKey(0)
    kx, kp = jax.random.split(key)
    x = jax.random.normal(kx, (2, C_IN, 16, 16), jnp.float32)   # NCHW input
    params = init_params(kp)

    out = jax.block_until_ready(network_forward(x, params))
    ref = jax.block_until_ready(reference_forward(x, params))

    assert out.shape == (2, OUT_FEATURES), out.shape
    assert jnp.allclose(out, ref, rtol=1e-4, atol=1e-4), (out, ref)
    print("KERNEL_OK")
</pallas_src>

<mosaic_0001>
module attributes {stable_mosaic.version = 11 : i64} {
  func.func @_fused_forward_kernel(%arg0: i32, %arg1: memref<128x512xf32, #tpu.memory_space<vmem>>, %arg2: memref<32x128xf32, #tpu.memory_space<vmem>>, %arg3: memref<32x1xf32, #tpu.memory_space<vmem>>, %arg4: memref<2x512xf32, #tpu.memory_space<vmem>>, %arg5: memref<32x10xf32, #tpu.memory_space<vmem>>, %arg6: memref<1x10xf32, #tpu.memory_space<vmem>>, %arg7: memref<2x10xf32, #tpu.memory_space<vmem>>) attributes {dimension_semantics = [#tpu.dimension_semantics<arbitrary>], iteration_bounds = array<i64: 1>, scalar_prefetch = 0 : i64, scratch_operands = 0 : i64, tpu.core_type = #tpu.core_type<tc>, window_params = [{pipeline_mode = #tpu.pipeline_mode<synchronous>, transform_indices = @transform_0, window_bounds = array<i64: 128, 512>}, {pipeline_mode = #tpu.pipeline_mode<synchronous>, transform_indices = @transform_1, window_bounds = array<i64: 32, 128>}, {pipeline_mode = #tpu.pipeline_mode<synchronous>, transform_indices = @transform_2, window_bounds = array<i64: 32, 1>}, {pipeline_mode = #tpu.pipeline_mode<synchronous>, transform_indices = @transform_3, window_bounds = array<i64: 2, 512>}, {pipeline_mode = #tpu.pipeline_mode<synchronous>, transform_indices = @transform_4, window_bounds = array<i64: 32, 10>}, {pipeline_mode = #tpu.pipeline_mode<synchronous>, transform_indices = @transform_5, window_bounds = array<i64: 1, 10>}, {pipeline_mode = #tpu.pipeline_mode<synchronous>, transform_indices = @transform_6, window_bounds = array<i64: 2, 10>}]} {
    %c0 = arith.constant 0 : index
    %c0_0 = arith.constant 0 : index
    %0 = vector.load %arg2[%c0, %c0_0] : memref<32x128xf32, #tpu.memory_space<vmem>>, vector<32x128xf32>
    %c0_1 = arith.constant 0 : index
    %c0_2 = arith.constant 0 : index
    %1 = vector.load %arg1[%c0_1, %c0_2] : memref<128x512xf32, #tpu.memory_space<vmem>>, vector<128x512xf32>
    %cst = arith.constant dense<0.000000e+00> : vector<32x512xf32>
    %2 = tpu.matmul %0, %1, %cst {dimension_numbers = #tpu.dot_dimension_numbers<[1], [0], [0], [1], [0, 0, 1, 1], [], []>} : vector<32x128xf32>, vector<128x512xf32>, vector<32x512xf32> -> vector<32x512xf32>
    %c0_3 = arith.constant 0 : index
    %c0_4 = arith.constant 0 : index
    %3 = vector.load %arg3[%c0_3, %c0_4] : memref<32x1xf32, #tpu.memory_space<vmem>>, vector<32x1xf32>
    %4 = vector.broadcast %3 : vector<32x1xf32> to vector<32x512xf32>
    %5 = arith.addf %2, %4 : vector<32x512xf32>
    %cst_5 = arith.constant 0.000000e+00 : f32
    %6 = vector.broadcast %cst_5 : f32 to vector<32x512xf32>
    %7 = arith.maximumf %5, %6 : vector<32x512xf32>
    %c0_6 = arith.constant 0 : index
    %c0_7 = arith.constant 0 : index
    %8 = vector.load %arg4[%c0_6, %c0_7] : memref<2x512xf32, #tpu.memory_space<vmem>>, vector<2x512xf32>
    %9 = tpu.transpose %7, [1, 0] : vector<32x512xf32> -> vector<512x32xf32>
    %cst_8 = arith.constant dense<0.000000e+00> : vector<2x32xf32>
    %10 = tpu.matmul %8, %9, %cst_8 {dimension_numbers = #tpu.dot_dimension_numbers<[1], [0], [0], [1], [0, 0, 1, 1], [], []>} : vector<2x512xf32>, vector<512x32xf32>, vector<2x32xf32> -> vector<2x32xf32>
    %c0_9 = arith.constant 0 : index
    %c0_10 = arith.constant 0 : index
    %11 = vector.load %arg5[%c0_9, %c0_10] : memref<32x10xf32, #tpu.memory_space<vmem>>, vector<32x10xf32>
    %cst_11 = arith.constant dense<0.000000e+00> : vector<2x10xf32>
    %12 = tpu.matmul %10, %11, %cst_11 {dimension_numbers = #tpu.dot_dimension_numbers<[1], [0], [0], [1], [0, 0, 1, 1], [], []>} : vector<2x32xf32>, vector<32x10xf32>, vector<2x10xf32> -> vector<2x10xf32>
    %c0_12 = arith.constant 0 : index
    %c0_13 = arith.constant 0 : index
    %13 = vector.load %arg6[%c0_12, %c0_13] : memref<1x10xf32, #tpu.memory_space<vmem>>, vector<1x10xf32>
    %14 = vector.broadcast %13 : vector<1x10xf32> to vector<2x10xf32>
    %15 = arith.addf %12, %14 : vector<2x10xf32>
    %c0_14 = arith.constant 0 : index
    %c0_15 = arith.constant 0 : index
    %16 = vector.load %arg7[%c0_14, %c0_15] : memref<2x10xf32, #tpu.memory_space<vmem>>, vector<2x10xf32>
    tpu.vector_store %arg7[%c0_14, %c0_15], %15 {strides = array<i32>} : memref<2x10xf32, #tpu.memory_space<vmem>>, vector<2x10xf32>,
    return
  }
  func.func @transform_0(%arg0: i32) -> (i32, i32) {
    %c0_i32 = arith.constant 0 : i32
    %c0_i32_0 = arith.constant 0 : i32
    %c0_i32_1 = arith.constant 0 : i32
    return %c0_i32, %c0_i32_0 : i32, i32
  }
  func.func @transform_1(%arg0: i32) -> (i32, i32) {
    %c0_i32 = arith.constant 0 : i32
    %c0_i32_0 = arith.constant 0 : i32
    %c0_i32_1 = arith.constant 0 : i32
    return %c0_i32, %c0_i32_0 : i32, i32
  }
  func.func @transform_2(%arg0: i32) -> (i32, i32) {
    %c0_i32 = arith.constant 0 : i32
    %c0_i32_0 = arith.constant 0 : i32
    %c0_i32_1 = arith.constant 0 : i32
    return %c0_i32, %c0_i32_0 : i32, i32
  }
  func.func @transform_3(%arg0: i32) -> (i32, i32) {
    %c0_i32 = arith.constant 0 : i32
    %c0_i32_0 = arith.constant 0 : i32
    %c0_i32_1 = arith.constant 0 : i32
    return %c0_i32, %c0_i32_0 : i32, i32
  }
  func.func @transform_4(%arg0: i32) -> (i32, i32) {
    %c0_i32 = arith.constant 0 : i32
    %c0_i32_0 = arith.constant 0 : i32
    %c0_i32_1 = arith.constant 0 : i32
    return %c0_i32, %c0_i32_0 : i32, i32
  }
  func.func @transform_5(%arg0: i32) -> (i32, i32) {
    %c0_i32 = arith.constant 0 : i32
    %c0_i32_0 = arith.constant 0 : i32
    %c0_i32_1 = arith.constant 0 : i32
    return %c0_i32, %c0_i32_0 : i32, i32
  }
  func.func @transform_6(%arg0: i32) -> (i32, i32) {
    %c0_i32 = arith.constant 0 : i32
    %c0_i32_0 = arith.constant 0 : i32
    %c0_i32_1 = arith.constant 0 : i32
    return %c0_i32, %c0_i32_0 : i32, i32
  }
}

</mosaic_0001>

<llo_original>
// kernel: tpu_custom_call.1
$region0: #{tpu_custom_call.1}
  #allocation0 [shape = 'u32[]', space=smem, size = 0x4, offset = 0x4, fixed_abs, tag = 'smem constant byte address 0x4 - core index']
  #allocation1 [shape = 'u32[144,128]{1,0:T(1,128)}', space=vmem, size = 0x12000, scoped, tag = 'internal scratch']
  %s0 = inlined_call_operand.hbm [shape: f32[128,512], index: 0, kind: input, shape index: {}]
  %s1 = inlined_call_operand.vmem [shape: f32[32,128], index: 1, kind: input, shape index: {}]
  %s2 = inlined_call_operand.vmem [shape: f32[32,1], index: 2, kind: input, shape index: {}]
  %s3 = inlined_call_operand.vmem [shape: f32[2,512], index: 3, kind: input, shape index: {}]
  %s4 = inlined_call_operand.vmem [shape: f32[32,10], index: 4, kind: input, shape index: {}]
  %s5 = inlined_call_operand.vmem [shape: f32[1,10], index: 5, kind: input, shape index: {}]
  %s6 = inlined_call_operand.hbm [shape: f32[2,10], index: 6, kind: output, shape index: {}]
  %s7 = sld [smem:[#allocation0]]
  $region38: #{tpu_custom_call.1} parent=0
    _
  %s9 = ssub.s32 1, %s7
  %s10 = scalar_select 0, %s9, %s7
  $region1: #{tpu_custom_call.1} parent=0
    #allocation2 [shape = 'u8[262144]{0}', space=vmem, size = 0x40000, scoped, tag = 'input window, operand 0, single buffered']
    #allocation3 [shape = 's32[1]{0}', space=sflag, size = 0x4, scoped, tag = 'scoped memory for tpu_custom_call.1']
    #allocation4 [shape = 's32[1]{0}', space=sflag, size = 0x4, scoped, tag = 'scoped memory for tpu_custom_call.1']
    #allocation5 [shape = 'u8[1024]{0}', space=vmem, size = 0x400, scoped, tag = 'output window, operand 0, single buffered']
    %11 = vsyncpa [#allocation3], 0
    %12 = vsyncpa [#allocation4], 0
    // Predicated region
    $region2: #{tpu_custom_call.1} parent=1 // pred_check
      _
    $region3: #{tpu_custom_call.1} parent=1 // pred_check_branch
      %14 = sbr.rel (0) target = $region5
    $region4: #{tpu_custom_call.1} parent=1 // pred_region
      %s16 = ssub.s32 8192, 8192
      %17 = vsyncadd [#allocation3], %s16
      %s18 = sshll.u32 [#allocation2], 4
      %s19 = int_to_ptr.vmem [resolvable:$true] %s18
      %24 = dma.hbm_to_vmem [thread:$0]  %s0, 8192, %s19, [#allocation3], 512, 512, 32
    $region5: #{tpu_custom_call.1} parent=1 // pred_fallthru
      _
    // Predicated region
    $region6: #{tpu_custom_call.1} parent=1 // pred_check
      _
    $region7: #{tpu_custom_call.1} parent=1 // pred_check_branch
      %26 = sbr.rel (0) target = $region9
    $region8: #{tpu_custom_call.1} parent=1 // pred_region
      _
    $region9: #{tpu_custom_call.1} parent=1 // pred_fallthru
      _
    // Predicated region
    $region10: #{tpu_custom_call.1} parent=1 // pred_check
      _
    $region11: #{tpu_custom_call.1} parent=1 // pred_check_branch
      %28 = sbr.rel (0) target = $region13
    $region12: #{tpu_custom_call.1} parent=1 // pred_region
      _
    $region13: #{tpu_custom_call.1} parent=1 // pred_fallthru
      _
    // Predicated region
    $region14: #{tpu_custom_call.1} parent=1 // pred_check
      _
    $region15: #{tpu_custom_call.1} parent=1 // pred_check_branch
      %30 = sbr.rel (0) target = $region17
    $region16: #{tpu_custom_call.1} parent=1 // pred_region
      _
    $region17: #{tpu_custom_call.1} parent=1 // pred_fallthru
      _
    // Predicated region
    $region18: #{tpu_custom_call.1} parent=1 // pred_check
      _
    $region19: #{tpu_custom_call.1} parent=1 // pred_check_branch
      %32 = sbr.rel (0) target = $region21
    $region20: #{tpu_custom_call.1} parent=1 // pred_region
      _
    $region21: #{tpu_custom_call.1} parent=1 // pred_fallthru
      _
    // Predicated region
    $region22: #{tpu_custom_call.1} parent=1 // pred_check
      _
    $region23: #{tpu_custom_call.1} parent=1 // pred_check_branch
      %34 = sbr.rel (0) target = $region25
    $region24: #{tpu_custom_call.1} parent=1 // pred_region
      _
    $region25: #{tpu_custom_call.1} parent=1 // pred_fallthru
      _
    // Predicated region
    $region26: #{tpu_custom_call.1} parent=1 // pred_check
      _
    $region27: #{tpu_custom_call.1} parent=1 // pred_check_branch
      %36 = sbr.rel (0) target = $region29
    $region28: #{tpu_custom_call.1} parent=1 // pred_region
      %37 = dma.done [#allocation3], 8192
    $region29: #{tpu_custom_call.1} parent=1 // pred_fallthru
      _
    %v38 = vld [vmem:[%s1] sm:$0xff]
    %v39 = vld [vmem:[%s1 + $0x8] sm:$0xff]
    %v40 = vld [vmem:[%s1 + $0x10] sm:$0xff]
    %v41 = vld [vmem:[%s1 + $0x18] sm:$0xff]
    %v42 = vld [vmem:[#allocation2] sm:$0xff]
    %v43 = vld [vmem:[#allocation2 + $0x8] sm:$0xff]
    %v44 = vld [vmem:[#allocation2 + $0x10] sm:$0xff]
    %v45 = vld [vmem:[#allocation2 + $0x18] sm:$0xff]
    %v46 = vld [vmem:[#allocation2 + $0x20] sm:$0xff]
    %v47 = vld [vmem:[#allocation2 + $0x28] sm:$0xff]
    %v48 = vld [vmem:[#allocation2 + $0x30] sm:$0xff]
    %v49 = vld [vmem:[#allocation2 + $0x38] sm:$0xff]
    %v50 = vld [vmem:[#allocation2 + $0x40] sm:$0xff]
    %v51 = vld [vmem:[#allocation2 + $0x48] sm:$0xff]
    %v52 = vld [vmem:[#allocation2 + $0x50] sm:$0xff]
    %v53 = vld [vmem:[#allocation2 + $0x58] sm:$0xff]
    %v54 = vld [vmem:[#allocation2 + $0x60] sm:$0xff]
    %v55 = vld [vmem:[#allocation2 + $0x68] sm:$0xff]
    %v56 = vld [vmem:[#allocation2 + $0x70] sm:$0xff]
    %v57 = vld [vmem:[#allocation2 + $0x78] sm:$0xff]
    %v58 = vld [vmem:[#allocation2 + $0x80] sm:$0xff]
    %v59 = vld [vmem:[#allocation2 + $0x88] sm:$0xff]
    %v60 = vld [vmem:[#allocation2 + $0x90] sm:$0xff]
    %v61 = vld [vmem:[#allocation2 + $0x98] sm:$0xff]
    %v62 = vld [vmem:[#allocation2 + $0xa0] sm:$0xff]
    %v63 = vld [vmem:[#allocation2 + $0xa8] sm:$0xff]
    %v64 = vld [vmem:[#allocation2 + $0xb0] sm:$0xff]
    %v65 = vld [vmem:[#allocation2 + $0xb8] sm:$0xff]
    %v66 = vld [vmem:[#allocation2 + $0xc0] sm:$0xff]
    %v67 = vld [vmem:[#allocation2 + $0xc8] sm:$0xff]
    %v68 = vld [vmem:[#allocation2 + $0xd0] sm:$0xff]
    %v69 = vld [vmem:[#allocation2 + $0xd8] sm:$0xff]
    %v70 = vld [vmem:[#allocation2 + $0xe0] sm:$0xff]
    %v71 = vld [vmem:[#allocation2 + $0xe8] sm:$0xff]
    %v72 = vld [vmem:[#allocation2 + $0xf0] sm:$0xff]
    %v73 = vld [vmem:[#allocation2 + $0xf8] sm:$0xff]
    %v74 = vld [vmem:[#allocation2 + $0x100] sm:$0xff]
    %v75 = vld [vmem:[#allocation2 + $0x108] sm:$0xff]
    %v76 = vld [vmem:[#allocation2 + $0x110] sm:$0xff]
    %v77 = vld [vmem:[#allocation2 + $0x118] sm:$0xff]
    %v78 = vld [vmem:[#allocation2 + $0x120] sm:$0xff]
    %v79 = vld [vmem:[#allocation2 + $0x128] sm:$0xff]
    %v80 = vld [vmem:[#allocation2 + $0x130] sm:$0xff]
    %v81 = vld [vmem:[#allocation2 + $0x138] sm:$0xff]
    %v82 = vld [vmem:[#allocation2 + $0x140] sm:$0xff]
    %v83 = vld [vmem:[#allocation2 + $0x148] sm:$0xff]
    %v84 = vld [vmem:[#allocation2 + $0x150] sm:$0xff]
    %v85 = vld [vmem:[#allocation2 + $0x158] sm:$0xff]
    %v86 = vld [vmem:[#allocation2 + $0x160] sm:$0xff]
    %v87 = vld [vmem:[#allocation2 + $0x168] sm:$0xff]
    %v88 = vld [vmem:[#allocation2 + $0x170] sm:$0xff]
    %v89 = vld [vmem:[#allocation2 + $0x178] sm:$0xff]
    %v90 = vld [vmem:[#allocation2 + $0x180] sm:$0xff]
    %v91 = vld [vmem:[#allocation2 + $0x188] sm:$0xff]
    %v92 = vld [vmem:[#allocation2 + $0x190] sm:$0xff]
    %v93 = vld [vmem:[#allocation2 + $0x198] sm:$0xff]
    %v94 = vld [vmem:[#allocation2 + $0x1a0] sm:$0xff]
    %v95 = vld [vmem:[#allocation2 + $0x1a8] sm:$0xff]
    %v96 = vld [vmem:[#allocation2 + $0x1b0] sm:$0xff]
    %v97 = vld [vmem:[#allocation2 + $0x1b8] sm:$0xff]
    %v98 = vld [vmem:[#allocation2 + $0x1c0] sm:$0xff]
    %v99 = vld [vmem:[#allocation2 + $0x1c8] sm:$0xff]
    %v100 = vld [vmem:[#allocation2 + $0x1d0] sm:$0xff]
    %v101 = vld [vmem:[#allocation2 + $0x1d8] sm:$0xff]
    %v102 = vld [vmem:[#allocation2 + $0x1e0] sm:$0xff]
    %v103 = vld [vmem:[#allocation2 + $0x1e8] sm:$0xff]
    %v104 = vld [vmem:[#allocation2 + $0x1f0] sm:$0xff]
    %v105 = vld [vmem:[#allocation2 + $0x1f8] sm:$0xff]
    %v106 = vld [vmem:[%s2] sm:$0xff]
    %v107 = vld [vmem:[%s2 + $0x8] sm:$0xff]
    %v108 = vld [vmem:[%s2 + $0x10] sm:$0xff]
    %v109 = vld [vmem:[%s2 + $0x18] sm:$0xff]
    %111 = vset.pattern.permute.xlu0 0
    %112 = vperm.xlu0 %111, %v106
    %v113 = vpop.permute.xlu0 %112
    %116 = vset.pattern.permute.xlu0 0
    %117 = vperm.xlu0 %116, %v107
    %v118 = vpop.permute.xlu0 %117
    %121 = vset.pattern.permute.xlu0 0
    %122 = vperm.xlu0 %121, %v108
    %v123 = vpop.permute.xlu0 %122
    %126 = vset.pattern.permute.xlu0 0
    %127 = vperm.xlu0 %126, %v109
    %v128 = vpop.permute.xlu0 %127
    %130 = vmatprep.subr.mxu0 %v43
    %131 = vmatpush1.msra.mxu0 %v42
    %132 = vmatprep.subr.mxu0 %v47
    %133 = vmatpush1.msra.mxu0 %v46
    %134 = vmatprep.subr.mxu0 %v51
    %135 = vmatpush1.msra.mxu0 %v50
    %136 = vmatprep.subr.mxu0 %v55
    %137 = vmatpush1.msra.mxu0 %v54
    %138 = vmatprep.subr.mxu0 %v59
    %139 = vmatpush1.msra.mxu0 %v58
    %140 = vmatprep.subr.mxu0 %v63
    %141 = vmatpush1.msra.mxu0 %v62
    %142 = vmatprep.subr.mxu0 %v67
    %143 = vmatpush1.msra.mxu0 %v66
    %144 = vmatprep.subr.mxu0 %v71
    %145 = vmatpush1.msra.mxu0 %v70
    %146 = vmatprep.subr.mxu0 %v75
    %147 = vmatpush1.msra.mxu0 %v74
    %148 = vmatprep.subr.mxu0 %v79
    %149 = vmatpush1.msra.mxu0 %v78
    %150 = vmatprep.subr.mxu0 %v83
    %151 = vmatpush1.msra.mxu0 %v82
    %152 = vmatprep.subr.mxu0 %v87
    %153 = vmatpush1.msra.mxu0 %v86
    %154 = vmatprep.subr.mxu0 %v91
    %155 = vmatpush1.msra.mxu0 %v90
    %156 = vmatprep.subr.mxu0 %v95
    %157 = vmatpush1.msra.mxu0 %v94
    %158 = vmatprep.subr.mxu0 %v99
    %159 = vmatpush1.msra.mxu0 %v98
    %160 = vmatprep.subr.mxu0 %v103
    %161 = vmatpush1.msra.mxu0 %v102
    %162 = vmatprep.subr.mxu0 0.0
    %163 = vmatpush1.msra.mxu0 0.0
    %164 = vmatprep.subr.mxu0 0.0
    %165 = vmatpush1.msra.mxu0 0.0
    %166 = vmatprep.subr.mxu0 0.0
    %167 = vmatpush1.msra.mxu0 0.0
    %168 = vmatprep.subr.mxu0 0.0
    %169 = vmatpush1.msra.mxu0 0.0
    %170 = vmatprep.subr.mxu0 0.0
    %171 = vmatpush1.msra.mxu0 0.0
    %172 = vmatprep.subr.mxu0 0.0
    %173 = vmatpush1.msra.mxu0 0.0
    %174 = vmatprep.subr.mxu0 0.0
    %175 = vmatpush1.msra.mxu0 0.0
    %176 = vmatprep.subr.mxu0 0.0
    %177 = vmatpush1.msra.mxu0 0.0
    %178 = vmatprep.subr.mxu0 0.0
    %179 = vmatpush1.msra.mxu0 0.0
    %180 = vmatprep.subr.mxu0 0.0
    %181 = vmatpush1.msra.mxu0 0.0
    %182 = vmatprep.subr.mxu0 0.0
    %183 = vmatpush1.msra.mxu0 0.0
    %184 = vmatprep.subr.mxu0 0.0
    %185 = vmatpush1.msra.mxu0 0.0
    %186 = vmatprep.subr.mxu0 0.0
    %187 = vmatpush1.msra.mxu0 0.0
    %188 = vmatprep.subr.mxu0 0.0
    %189 = vmatpush1.msra.mxu0 0.0
    %190 = vmatprep.subr.mxu0 0.0
    %191 = vmatpush1.msra.mxu0 0.0
    %192 = vmatprep.subr.mxu0 0.0
    %193 = vmatpush1.msra.mxu0 0.0
    %194 = vmatprep.mubr.f32.mxu0 0.0
    %195 = vmatmul.mubr.f32.gmra.mrb[0].mxu0 %v38
    %v196 = vpop.f32.mrb[0].mxu0
    %v197 = vadd.f32 %v113, %v196
    %v198 = vpop.f32.mrb[0].mxu0
    %v199 = vadd.f32 %v113, %v198
    %200 = vmatprep.mubr.f32.mxu0 0.0
    %201 = vmatmul.mubr.f32.gmra.mrb[0].mxu0 %v39
    %v202 = vpop.f32.mrb[0].mxu0
    %v203 = vadd.f32 %v118, %v202
    %v204 = vpop.f32.mrb[0].mxu0
    %v205 = vadd.f32 %v118, %v204
    %206 = vmatprep.mubr.f32.mxu0 0.0
    %207 = vmatmul.mubr.f32.gmra.mrb[0].mxu0 %v40
    %v208 = vpop.f32.mrb[0].mxu0
    %v209 = vadd.f32 %v123, %v208
    %v210 = vpop.f32.mrb[0].mxu0
    %v211 = vadd.f32 %v123, %v210
    %212 = vmatprep.mubr.f32.mxu0 0.0
    %213 = vmatmul.mubr.f32.gmra.mrb[0].mxu0 %v41
    %v214 = vpop.f32.mrb[0].mxu0
    %v215 = vadd.f32 %v128, %v214
    %v216 = vpop.f32.mrb[0].mxu0
    %v217 = vadd.f32 %v128, %v216
    %218 = vdwg.mxu0
    %219 = vmatprep.subr.mxu0 %v45
    %220 = vmatpush1.msra.mxu0 %v44
    %221 = vmatprep.subr.mxu0 %v49
    %222 = vmatpush1.msra.mxu0 %v48
    %223 = vmatprep.subr.mxu0 %v53
    %224 = vmatpush1.msra.mxu0 %v52
    %225 = vmatprep.subr.mxu0 %v57
    %226 = vmatpush1.msra.mxu0 %v56
    %227 = vmatprep.subr.mxu0 %v61
    %228 = vmatpush1.msra.mxu0 %v60
    %229 = vmatprep.subr.mxu0 %v65
    %230 = vmatpush1.msra.mxu0 %v64
    %231 = vmatprep.subr.mxu0 %v69
    %232 = vmatpush1.msra.mxu0 %v68
    %233 = vmatprep.subr.mxu0 %v73
    %234 = vmatpush1.msra.mxu0 %v72
    %235 = vmatprep.subr.mxu0 %v77
    %236 = vmatpush1.msra.mxu0 %v76
    %237 = vmatprep.subr.mxu0 %v81
    %238 = vmatpush1.msra.mxu0 %v80
    %239 = vmatprep.subr.mxu0 %v85
    %240 = vmatpush1.msra.mxu0 %v84
    %241 = vmatprep.subr.mxu0 %v89
    %242 = vmatpush1.msra.mxu0 %v88
    %243 = vmatprep.subr.mxu0 %v93
    %244 = vmatpush1.msra.mxu0 %v92
    %245 = vmatprep.subr.mxu0 %v97
    %246 = vmatpush1.msra.mxu0 %v96
    %247 = vmatprep.subr.mxu0 %v101
    %248 = vmatpush1.msra.mxu0 %v100
    %249 = vmatprep.subr.mxu0 %v105
    %250 = vmatpush1.msra.mxu0 %v104
    %251 = vmatprep.subr.mxu0 0.0
    %252 = vmatpush1.msra.mxu0 0.0
    %253 = vmatprep.subr.mxu0 0.0
    %254 = vmatpush1.msra.mxu0 0.0
    %255 = vmatprep.subr.mxu0 0.0
    %256 = vmatpush1.msra.mxu0 0.0
    %257 = vmatprep.subr.mxu0 0.0
    %258 = vmatpush1.msra.mxu0 0.0
    %259 = vmatprep.subr.mxu0 0.0
    %260 = vmatpush1.msra.mxu0 0.0
    %261 = vmatprep.subr.mxu0 0.0
    %262 = vmatpush1.msra.mxu0 0.0
    %263 = vmatprep.subr.mxu0 0.0
    %264 = vmatpush1.msra.mxu0 0.0
    %265 = vmatprep.subr.mxu0 0.0
    %266 = vmatpush1.msra.mxu0 0.0
    %267 = vmatprep.subr.mxu0 0.0
    %268 = vmatpush1.msra.mxu0 0.0
    %269 = vmatprep.subr.mxu0 0.0
    %270 = vmatpush1.msra.mxu0 0.0
    %271 = vmatprep.subr.mxu0 0.0
    %272 = vmatpush1.msra.mxu0 0.0
    %273 = vmatprep.subr.mxu0 0.0
    %274 = vmatpush1.msra.mxu0 0.0
    %275 = vmatprep.subr.mxu0 0.0
    %276 = vmatpush1.msra.mxu0 0.0
    %277 = vmatprep.subr.mxu0 0.0
    %278 = vmatpush1.msra.mxu0 0.0
    %279 = vmatprep.subr.mxu0 0.0
    %280 = vmatpush1.msra.mxu0 0.0
    %281 = vmatprep.subr.mxu0 0.0
    %282 = vmatpush1.msra.mxu0 0.0
    %283 = vmatprep.mubr.f32.mxu0 0.0
    %284 = vmatmul.mubr.f32.gmra.mrb[0].mxu0 %v38
    %v285 = vpop.f32.mrb[0].mxu0
    %v286 = vadd.f32 %v113, %v285
    %v287 = vpop.f32.mrb[0].mxu0
    %v288 = vadd.f32 %v113, %v287
    %289 = vmatprep.mubr.f32.mxu0 0.0
    %290 = vmatmul.mubr.f32.gmra.mrb[0].mxu0 %v39
    %v291 = vpop.f32.mrb[0].mxu0
    %v292 = vadd.f32 %v118, %v291
    %v293 = vpop.f32.mrb[0].mxu0
    %v294 = vadd.f32 %v118, %v293
    %295 = vmatprep.mubr.f32.mxu0 0.0
    %296 = vmatmul.mubr.f32.gmra.mrb[0].mxu0 %v40
    %v297 = vpop.f32.mrb[0].mxu0
    %v298 = vadd.f32 %v123, %v297
    %v299 = vpop.f32.mrb[0].mxu0
    %v300 = vadd.f32 %v123, %v299
    %301 = vmatprep.mubr.f32.mxu0 0.0
    %302 = vmatmul.mubr.f32.gmra.mrb[0].mxu0 %v41
    %v303 = vpop.f32.mrb[0].mxu0
    %v304 = vadd.f32 %v128, %v303
    %v305 = vpop.f32.mrb[0].mxu0
    %v306 = vadd.f32 %v128, %v305
    %307 = vdwg.mxu0
    %v308 = vmax.f32 %v197, 0.0
    %v309 = vmax.f32 %v199, 0.0
    %v310 = vmax.f32 %v286, 0.0
    %v311 = vmax.f32 %v288, 0.0
    %v312 = vmax.f32 %v203, 0.0
    %v313 = vmax.f32 %v205, 0.0
    %v314 = vmax.f32 %v292, 0.0
    %v315 = vmax.f32 %v294, 0.0
    %v316 = vmax.f32 %v209, 0.0
    %v317 = vmax.f32 %v211, 0.0
    %v318 = vmax.f32 %v298, 0.0
    %v319 = vmax.f32 %v300, 0.0
    %v320 = vmax.f32 %v215, 0.0
    %v321 = vmax.f32 %v217, 0.0
    %v322 = vmax.f32 %v304, 0.0
    %v323 = vmax.f32 %v306, 0.0
    %v324 = vld [vmem:[%s3] sm:$0xff]
    %v326 = vcombine.high %v324, %v324
    %v328 = vunpack.c.l.s4 1983009808
    %v329 = vunpack.c.0.s8 %v328
    %v330 = vlaneseq
    %v331 = vshrl.u32 %v330, 7
    %v332 = vsub.s32 %v329, %v331
    %v333 = vrot.slane %v324, %v332
    %v335 = vunpack.c.l.s4 1983009808
    %v336 = vunpack.c.0.s8 %v335
    %v337 = vlaneseq
    %v338 = vshrl.u32 %v337, 7
    %v339 = vsub.s32 %v336, %v338
    %v340 = vrot.slane %v326, %v339
    %v341 = vcombine.high %v333, %v333
    %v342 = vcombine.high %v340, %v340
    %347 = vmatprep.subr.mxu0 %v309
    %348 = vmatpush1.xpose.msra.mxu0 %v308
    %349 = vmatprep.subr.mxu0 %v313
    %350 = vmatpush1.xpose.msra.mxu0 %v312
    %351 = vmatprep.subr.mxu0 %v317
    %352 = vmatpush1.xpose.msra.mxu0 %v316
    %353 = vmatprep.subr.mxu0 %v321
    %354 = vmatpush1.xpose.msra.mxu0 %v320
    %355 = vmatprep.subr.mxu0 0.0
    %356 = vmatpush1.xpose.msra.mxu0 0.0
    %357 = vmatprep.subr.mxu0 0.0
    %358 = vmatpush1.xpose.msra.mxu0 0.0
    %359 = vmatprep.subr.mxu0 0.0
    %360 = vmatpush1.xpose.msra.mxu0 0.0
    %361 = vmatprep.subr.mxu0 0.0
    %362 = vmatpush1.xpose.msra.mxu0 0.0
    %363 = vmatprep.subr.mxu0 0.0
    %364 = vmatpush1.xpose.msra.mxu0 0.0
    %365 = vmatprep.subr.mxu0 0.0
    %366 = vmatpush1.xpose.msra.mxu0 0.0
    %367 = vmatprep.subr.mxu0 0.0
    %368 = vmatpush1.xpose.msra.mxu0 0.0
    %369 = vmatprep.subr.mxu0 0.0
    %370 = vmatpush1.xpose.msra.mxu0 0.0
    %371 = vmatprep.subr.mxu0 0.0
    %372 = vmatpush1.xpose.msra.mxu0 0.0
    %373 = vmatprep.subr.mxu0 0.0
    %374 = vmatpush1.xpose.msra.mxu0 0.0
    %375 = vmatprep.subr.mxu0 0.0
    %376 = vmatpush1.xpose.msra.mxu0 0.0
    %377 = vmatprep.subr.mxu0 0.0
    %378 = vmatpush1.xpose.msra.mxu0 0.0
    %379 = vmatprep.subr.mxu0 0.0
    %380 = vmatpush1.xpose.msra.mxu0 0.0
    %381 = vmatprep.subr.mxu0 0.0
    %382 = vmatpush1.xpose.msra.mxu0 0.0
    %383 = vmatprep.subr.mxu0 0.0
    %384 = vmatpush1.xpose.msra.mxu0 0.0
    %385 = vmatprep.subr.mxu0 0.0
    %386 = vmatpush1.xpose.msra.mxu0 0.0
    %387 = vmatprep.subr.mxu0 0.0
    %388 = vmatpush1.xpose.msra.mxu0 0.0
    %389 = vmatprep.subr.mxu0 0.0
    %390 = vmatpush1.xpose.msra.mxu0 0.0
    %391 = vmatprep.subr.mxu0 0.0
    %392 = vmatpush1.xpose.msra.mxu0 0.0
    %393 = vmatprep.subr.mxu0 0.0
    %394 = vmatpush1.xpose.msra.mxu0 0.0
    %395 = vmatprep.subr.mxu0 0.0
    %396 = vmatpush1.xpose.msra.mxu0 0.0
    %397 = vmatprep.subr.mxu0 0.0
    %398 = vmatpush1.xpose.msra.mxu0 0.0
    %399 = vmatprep.subr.mxu0 0.0
    %400 = vmatpush1.xpose.msra.mxu0 0.0
    %401 = vmatprep.subr.mxu0 0.0
    %402 = vmatpush1.xpose.msra.mxu0 0.0
    %403 = vmatprep.subr.mxu0 0.0
    %404 = vmatpush1.xpose.msra.mxu0 0.0
    %405 = vmatprep.subr.mxu0 0.0
    %406 = vmatpush1.xpose.msra.mxu0 0.0
    %407 = vmatprep.subr.mxu0 0.0
    %408 = vmatpush1.xpose.msra.mxu0 0.0
    %409 = vmatprep.subr.mxu0 0.0
    %410 = vmatpush1.xpose.msra.mxu0 0.0
    %411 = vmatprep.mubr.f32.mxu0 %v341
    %412 = vmatmul.mubr.f32.gmra.mrb[0].mxu0 %v333
    %v413 = vpop.f32.mrb[0].mxu0
    %v414 = vadd.f32 0.0, %v413
    %v415 = vpop.f32.mrb[0].mxu0
    %416 = vdwg.mxu0
    %417 = vmatprep.subr.mxu0 %v311
    %418 = vmatpush1.xpose.msra.mxu0 %v310
    %419 = vmatprep.subr.mxu0 %v315
    %420 = vmatpush1.xpose.msra.mxu0 %v314
    %421 = vmatprep.subr.mxu0 %v319
    %422 = vmatpush1.xpose.msra.mxu0 %v318
    %423 = vmatprep.subr.mxu0 %v323
    %424 = vmatpush1.xpose.msra.mxu0 %v322
    %425 = vmatprep.subr.mxu0 0.0
    %426 = vmatpush1.xpose.msra.mxu0 0.0
    %427 = vmatprep.subr.mxu0 0.0
    %428 = vmatpush1.xpose.msra.mxu0 0.0
    %429 = vmatprep.subr.mxu0 0.0
    %430 = vmatpush1.xpose.msra.mxu0 0.0
    %431 = vmatprep.subr.mxu0 0.0
    %432 = vmatpush1.xpose.msra.mxu0 0.0
    %433 = vmatprep.subr.mxu0 0.0
    %434 = vmatpush1.xpose.msra.mxu0 0.0
    %435 = vmatprep.subr.mxu0 0.0
    %436 = vmatpush1.xpose.msra.mxu0 0.0
    %437 = vmatprep.subr.mxu0 0.0
    %438 = vmatpush1.xpose.msra.mxu0 0.0
    %439 = vmatprep.subr.mxu0 0.0
    %440 = vmatpush1.xpose.msra.mxu0 0.0
    %441 = vmatprep.subr.mxu0 0.0
    %442 = vmatpush1.xpose.msra.mxu0 0.0
    %443 = vmatprep.subr.mxu0 0.0
    %444 = vmatpush1.xpose.msra.mxu0 0.0
    %445 = vmatprep.subr.mxu0 0.0
    %446 = vmatpush1.xpose.msra.mxu0 0.0
    %447 = vmatprep.subr.mxu0 0.0
    %448 = vmatpush1.xpose.msra.mxu0 0.0
    %449 = vmatprep.subr.mxu0 0.0
    %450 = vmatpush1.xpose.msra.mxu0 0.0
    %451 = vmatprep.subr.mxu0 0.0
    %452 = vmatpush1.xpose.msra.mxu0 0.0
    %453 = vmatprep.subr.mxu0 0.0
    %454 = vmatpush1.xpose.msra.mxu0 0.0
    %455 = vmatprep.subr.mxu0 0.0
    %456 = vmatpush1.xpose.msra.mxu0 0.0
    %457 = vmatprep.subr.mxu0 0.0
    %458 = vmatpush1.xpose.msra.mxu0 0.0
    %459 = vmatprep.subr.mxu0 0.0
    %460 = vmatpush1.xpose.msra.mxu0 0.0
    %461 = vmatprep.subr.mxu0 0.0
    %462 = vmatpush1.xpose.msra.mxu0 0.0
    %463 = vmatprep.subr.mxu0 0.0
    %464 = vmatpush1.xpose.msra.mxu0 0.0
    %465 = vmatprep.subr.mxu0 0.0
    %466 = vmatpush1.xpose.msra.mxu0 0.0
    %467 = vmatprep.subr.mxu0 0.0
    %468 = vmatpush1.xpose.msra.mxu0 0.0
    %469 = vmatprep.subr.mxu0 0.0
    %470 = vmatpush1.xpose.msra.mxu0 0.0
    %471 = vmatprep.subr.mxu0 0.0
    %472 = vmatpush1.xpose.msra.mxu0 0.0
    %473 = vmatprep.subr.mxu0 0.0
    %474 = vmatpush1.xpose.msra.mxu0 0.0
    %475 = vmatprep.subr.mxu0 0.0
    %476 = vmatpush1.xpose.msra.mxu0 0.0
    %477 = vmatprep.subr.mxu0 0.0
    %478 = vmatpush1.xpose.msra.mxu0 0.0
    %479 = vmatprep.subr.mxu0 0.0
    %480 = vmatpush1.xpose.msra.mxu0 0.0
    %481 = vmatprep.mubr.f32.mxu0 %v342
    %482 = vmatmul.mubr.f32.gmra.mrb[0].mxu0 %v340
    %v483 = vpop.f32.mrb[0].mxu0
    %v484 = vadd.f32 %v414, %v483
    %v485 = vpop.f32.mrb[0].mxu0
    %486 = vdwg.mxu0
    %v487 = vld [vmem:[%s4] sm:$0xff]
    %v488 = vld [vmem:[%s4 + $0x8] sm:$0xff]
    %v489 = vld [vmem:[%s4 + $0x10] sm:$0xff]
    %v490 = vld [vmem:[%s4 + $0x18] sm:$0xff]
    %v491 = vld [vmem:[%s5] sm:$0x1]
    %v493 = vlaneseq
    %v494 = vshrl.u32 %v493, 7
    %v495 = vsub.s32 0, %v494
    %v496 = vrot.slane %v491, %v495
    %vm498 = vcmask 261120
    %v500 = vsel %vm498, %v484, 0
    %502 = vmatprep.subr.mxu0 0.0
    %503 = vmatpush1.msra.mxu0 %v487
    %504 = vmatprep.subr.mxu0 0.0
    %505 = vmatpush1.msra.mxu0 %v488
    %506 = vmatprep.subr.mxu0 0.0
    %507 = vmatpush1.msra.mxu0 %v489
    %508 = vmatprep.subr.mxu0 0.0
    %509 = vmatpush1.msra.mxu0 %v490
    %510 = vmatprep.subr.mxu0 0.0
    %511 = vmatpush1.msra.mxu0 0.0
    %512 = vmatprep.subr.mxu0 0.0
    %513 = vmatpush1.msra.mxu0 0.0
    %514 = vmatprep.subr.mxu0 0.0
    %515 = vmatpush1.msra.mxu0 0.0
    %516 = vmatprep.subr.mxu0 0.0
    %517 = vmatpush1.msra.mxu0 0.0
    %518 = vmatprep.subr.mxu0 0.0
    %519 = vmatpush1.msra.mxu0 0.0
    %520 = vmatprep.subr.mxu0 0.0
    %521 = vmatpush1.msra.mxu0 0.0
    %522 = vmatprep.subr.mxu0 0.0
    %523 = vmatpush1.msra.mxu0 0.0
    %524 = vmatprep.subr.mxu0 0.0
    %525 = vmatpush1.msra.mxu0 0.0
    %526 = vmatprep.subr.mxu0 0.0
    %527 = vmatpush1.msra.mxu0 0.0
    %528 = vmatprep.subr.mxu0 0.0
    %529 = vmatpush1.msra.mxu0 0.0
    %530 = vmatprep.subr.mxu0 0.0
    %531 = vmatpush1.msra.mxu0 0.0
    %532 = vmatprep.subr.mxu0 0.0
    %533 = vmatpush1.msra.mxu0 0.0
    %534 = vmatprep.subr.mxu0 0.0
    %535 = vmatpush1.msra.mxu0 0.0
    %536 = vmatprep.subr.mxu0 0.0
    %537 = vmatpush1.msra.mxu0 0.0
    %538 = vmatprep.subr.mxu0 0.0
    %539 = vmatpush1.msra.mxu0 0.0
    %540 = vmatprep.subr.mxu0 0.0
    %541 = vmatpush1.msra.mxu0 0.0
    %542 = vmatprep.subr.mxu0 0.0
    %543 = vmatpush1.msra.mxu0 0.0
    %544 = vmatprep.subr.mxu0 0.0
    %545 = vmatpush1.msra.mxu0 0.0
    %546 = vmatprep.subr.mxu0 0.0
    %547 = vmatpush1.msra.mxu0 0.0
    %548 = vmatprep.subr.mxu0 0.0
    %549 = vmatpush1.msra.mxu0 0.0
    %550 = vmatprep.subr.mxu0 0.0
    %551 = vmatpush1.msra.mxu0 0.0
    %552 = vmatprep.subr.mxu0 0.0
    %553 = vmatpush1.msra.mxu0 0.0
    %554 = vmatprep.subr.mxu0 0.0
    %555 = vmatpush1.msra.mxu0 0.0
    %556 = vmatprep.subr.mxu0 0.0
    %557 = vmatpush1.msra.mxu0 0.0
    %558 = vmatprep.subr.mxu0 0.0
    %559 = vmatpush1.msra.mxu0 0.0
    %560 = vmatprep.subr.mxu0 0.0
    %561 = vmatpush1.msra.mxu0 0.0
    %562 = vmatprep.subr.mxu0 0.0
    %563 = vmatpush1.msra.mxu0 0.0
    %564 = vmatprep.subr.mxu0 0.0
    %565 = vmatpush1.msra.mxu0 0.0
    %566 = vmatprep.mubr.f32.mxu0 0.0
    %567 = vmatmul.mubr.f32.gmra.mrb[0].mxu0 %v500
    %v568 = vpop.f32.mrb[0].mxu0
    %v569 = vadd.f32 %v496, %v568
    %v570 = vpop.f32.mrb[0].mxu0
    %571 = vdwg.mxu0
    %vm572 = vcmask 74752
    %573 = vst.msk [vmem:[#allocation5] sm:$0x3] %vm572, %v569
    // Predicated region
    $region30: #{tpu_custom_call.1} parent=1 // pred_check
      _
    $region31: #{tpu_custom_call.1} parent=1 // pred_check_branch
      %575 = sbr.rel (0) target = $region33
    $region32: #{tpu_custom_call.1} parent=1 // pred_region
      %s577 = ssub.s32 32, 32
      %578 = vsyncadd [#allocation4], %s577
      %s580 = sshll.u32 [#allocation5], 4
      %s581 = int_to_ptr.vmem [resolvable:$true] %s580
      %583 = dma.vmem_to_hbm [thread:$0]  %s581, 32, %s6, [#allocation4]
    $region33: #{tpu_custom_call.1} parent=1 // pred_fallthru
      _
    // Predicated region
    $region34: #{tpu_custom_call.1} parent=1 // pred_check
      _
    $region35: #{tpu_custom_call.1} parent=1 // pred_check_branch
      %585 = sbr.rel (0) target = $region37
    $region36: #{tpu_custom_call.1} parent=1 // pred_region
      %586 = dma.done [#allocation4], 32
    $region37: #{tpu_custom_call.1} parent=1 // pred_fallthru
      _
    %587 = vsyncpa [#allocation3], 1
    %588 = vsyncpa [#allocation4], 1

</llo_original>
